<compile_context>
chip_gen: v5e
topology: v5e:2x2
jax: 0.10.0
libtpu: 0.0.40
codegen_flags: <defaults>
</compile_context>

<pallas_src>
import functools

import jax
import jax.numpy as jnp
from jax.experimental import pallas as pl
from jax.experimental.pallas import tpu as pltpu


def _lstm_rec_kernel(gx_ref, whh_ref, h_out_ref, h_ref, c_ref, *, t_blk):
    """One grid step: run t_blk LSTM timesteps, carrying (h, c) in scratch.

    gx_ref : (t_blk, B_BLK, 4H)  precomputed x-projection + bias (gate order i,f,o,g)
    whh_ref: (H, 4H)             pre-transposed recurrent weights (gate order i,f,o,g)
    h_out_ref: (B_BLK, H)        last hidden state (written at final time block)
    h_ref, c_ref: (B_BLK, H)     recurrent state scratch
    """
    t = pl.program_id(1)
    H = h_ref.shape[-1]

    @pl.when(t == 0)
    def _():
        h_ref[...] = jnp.zeros_like(h_ref)
        c_ref[...] = jnp.zeros_like(c_ref)

    def step(tt, carry):
        h, c = carry
        # gates = gates_x[t] + h @ W_hh^T   (W_hh already transposed on host)
        g = gx_ref[tt] + jnp.dot(h, whh_ref[...],
                                 preferred_element_type=jnp.float32)
        # One wide sigmoid over the contiguous [i, f, o] slab, one tanh for g.
        sig = jax.nn.sigmoid(g[:, :3 * H])
        i_g = sig[:, 0:H]
        f_g = sig[:, H:2 * H]
        o_g = sig[:, 2 * H:3 * H]
        g_g = jnp.tanh(g[:, 3 * H:])
        c = f_g * c + i_g * g_g
        h = o_g * jnp.tanh(c)
        return (h, c)

    h, c = jax.lax.fori_loop(0, t_blk, step, (h_ref[...], c_ref[...]),
                             unroll=True)
    h_ref[...] = h
    c_ref[...] = c

    @pl.when(t == pl.num_programs(1) - 1)
    def _():
        h_out_ref[...] = h


def _largest_divisor_leq(n, cap):
    for d in range(min(n, cap), 0, -1):
        if n % d == 0:
            return d
    return 1


def _choose_batch_block(b_pad):
    # Largest multiple of 8 that divides b_pad and is <= 128.
    best = 8
    d = 8
    while d <= min(b_pad, 128):
        if b_pad % d == 0:
            best = d
        d += 8
    return best


def lstm_regression_forward(x, w_ih, w_hh, b_ih, b_hh, fc_w, fc_b,
                            *, max_t_blk=32):
    """x: (B, T, D) float32. Returns (B, output_dim) float32."""
    B, T, D = x.shape
    H4 = w_ih.shape[0]
    H = H4 // 4
    O = fc_w.shape[0]

    # --- Host-side prep (one-time, outside the recurrence) ------------------
    # Permute gate order [i, f, g, o] (PyTorch) -> [i, f, o, g] so that the
    # kernel applies one contiguous sigmoid to [:, :3H] and tanh to [:, 3H:].
    perm = jnp.concatenate([
        jnp.arange(0, H),            # i
        jnp.arange(H, 2 * H),        # f
        jnp.arange(3 * H, 4 * H),    # o
        jnp.arange(2 * H, 3 * H),    # g
    ])
    w_ih_p = w_ih[perm]              # (4H, D)
    w_hh_t = w_hh[perm].T            # (H, 4H)  pre-transposed for the kernel
    b_p = (b_ih + b_hh)[perm]        # (4H,)

    # Pad batch to a multiple of 8 (sublane) — padded rows are sliced off.
    B_pad = ((B + 7) // 8) * 8
    if B_pad != B:
        x = jnp.pad(x, ((0, B_pad - B), (0, 0), (0, 0)))

    # Precompute the input projection for ALL timesteps in one big matmul,
    # emitted directly time-major: gates_x (T, B_pad, 4H).
    gates_x = jnp.einsum('btd,gd->tbg', x, w_ih_p) + b_p
    gates_x = gates_x.astype(jnp.float32)

    # --- Tiling -------------------------------------------------------------
    T_BLK = _largest_divisor_leq(T, max_t_blk)
    B_BLK = _choose_batch_block(B_pad)
    grid = (B_pad // B_BLK, T // T_BLK)

    grid_spec = pltpu.PrefetchScalarGridSpec(
        num_scalar_prefetch=0,
        grid=grid,
        in_specs=[
            # Precomputed gate inputs for this (batch block, time block).
            pl.BlockSpec((T_BLK, B_BLK, 4 * H), lambda b, t: (t, b, 0)),
            # Loop-invariant recurrent weights.
            pl.BlockSpec((H, 4 * H), lambda b, t: (0, 0)),
        ],
        # Last hidden state per batch block; resident across the time axis.
        out_specs=pl.BlockSpec((B_BLK, H), lambda b, t: (b, 0)),
        scratch_shapes=[
            pltpu.VMEM((B_BLK, H), jnp.float32),   # h state
            pltpu.VMEM((B_BLK, H), jnp.float32),   # c state
        ],
    )

    h_last = pl.pallas_call(
        functools.partial(_lstm_rec_kernel, t_blk=T_BLK),
        out_shape=jax.ShapeDtypeStruct((B_pad, H), jnp.float32),
        grid_spec=grid_spec,
        compiler_params=pltpu.CompilerParams(
            # batch blocks are independent (megacore), time is a recurrence.
            dimension_semantics=("parallel", "arbitrary"),
        ),
    )(gates_x, w_hh_t)

    # relu -> dropout (identity at inference) -> final linear, on the real batch.
    # TODO(synk): PyTorch nn.Dropout in training mode would randomly mask
    # activations; inference-mode (identity) dropout is implemented here.
    y = jnp.maximum(h_last[:B], 0.0)
    return y @ fc_w.T + fc_b


def _reference_forward(x, w_ih, w_hh, b_ih, b_hh, fc_w, fc_b):
    """Pure-JAX reference of the PyTorch module forward (inference mode)."""
    B, T, D = x.shape
    H = w_hh.shape[1]

    def step(carry, x_t):
        h, c = carry
        gates = x_t @ w_ih.T + h @ w_hh.T + b_ih + b_hh
        i = jax.nn.sigmoid(gates[:, 0:H])
        f = jax.nn.sigmoid(gates[:, H:2 * H])
        g = jnp.tanh(gates[:, 2 * H:3 * H])
        o = jax.nn.sigmoid(gates[:, 3 * H:4 * H])
        c = f * c + i * g
        h = o * jnp.tanh(c)
        return (h, c), None

    (h, _), _ = jax.lax.scan(step,
                             (jnp.zeros((B, H), jnp.float32),
                              jnp.zeros((B, H), jnp.float32)),
                             jnp.transpose(x, (1, 0, 2)))
    y = jnp.maximum(h, 0.0)
    return y @ fc_w.T + fc_b


if __name__ == "__main__":
    # Small, deterministic problem sizes consistent with the module.
    B, T, D = 2, 8, 16          # batch, seq len, input_dim
    H = 32                      # lstm_hidden_dim (scaled down from 128)
    O = 4                       # output_dim

    key = jax.random.PRNGKey(0)
    ks = jax.random.split(key, 8)
    scale = 1.0 / jnp.sqrt(H)   # PyTorch-style uniform(-1/sqrt(H), 1/sqrt(H))

    x = jax.random.normal(ks[0], (B, T, D), dtype=jnp.float32)
    w_ih = jax.random.uniform(ks[1], (4 * H, D), jnp.float32, -scale, scale)
    w_hh = jax.random.uniform(ks[2], (4 * H, H), jnp.float32, -scale, scale)
    b_ih = jax.random.uniform(ks[3], (4 * H,), jnp.float32, -scale, scale)
    b_hh = jax.random.uniform(ks[4], (4 * H,), jnp.float32, -scale, scale)
    fc_w = jax.random.uniform(ks[5], (O, H), jnp.float32, -scale, scale)
    fc_b = jax.random.uniform(ks[6], (O,), jnp.float32, -scale, scale)

    out = lstm_regression_forward(x, w_ih, w_hh, b_ih, b_hh, fc_w, fc_b)
    out = jax.block_until_ready(out)

    ref = _reference_forward(x, w_ih, w_hh, b_ih, b_hh, fc_w, fc_b)
    assert out.shape == (B, O)
    assert jnp.allclose(out, ref, atol=1e-5, rtol=1e-5), (out, ref)

    print("KERNEL_OK")
</pallas_src>

<mosaic_0001>
module attributes {stable_mosaic.version = 11 : i64} {
  func.func @_lstm_rec_kernel(%arg0: i32, %arg1: i32, %arg2: memref<8x8x128xf32, #tpu.memory_space<vmem>>, %arg3: memref<32x128xf32, #tpu.memory_space<vmem>>, %arg4: memref<8x32xf32, #tpu.memory_space<vmem>>, %arg5: memref<8x32xf32, #tpu.memory_space<vmem>>, %arg6: memref<8x32xf32, #tpu.memory_space<vmem>>) attributes {dimension_semantics = [#tpu.dimension_semantics<parallel>, #tpu.dimension_semantics<arbitrary>], iteration_bounds = array<i64: 1, 1>, scalar_prefetch = 0 : i64, scratch_operands = 2 : i64, tpu.core_type = #tpu.core_type<tc>, window_params = [{transform_indices = @transform_0, window_bounds = array<i64: 8, 8, 128>}, {pipeline_mode = #tpu.pipeline_mode<synchronous>, transform_indices = @transform_1, window_bounds = array<i64: 32, 128>}, {transform_indices = @transform_2, window_bounds = array<i64: 8, 32>}]} {
    %c0_i32 = arith.constant 0 : i32
    %0 = arith.cmpi eq, %arg1, %c0_i32 : i32
    %1 = arith.extui %0 : i1 to i32
    %c0_i32_0 = arith.constant 0 : i32
    %2 = arith.cmpi ne, %1, %c0_i32_0 : i32
    scf.if %2 {
      %cst_58 = arith.constant 0.000000e+00 : f32
      %186 = vector.broadcast %cst_58 : f32 to vector<8x32xf32>
      %c0_59 = arith.constant 0 : index
      %c0_60 = arith.constant 0 : index
      %187 = vector.load %arg5[%c0_59, %c0_60] : memref<8x32xf32, #tpu.memory_space<vmem>>, vector<8x32xf32>
      tpu.vector_store %arg5[%c0_59, %c0_60], %186 {strides = array<i32>} : memref<8x32xf32, #tpu.memory_space<vmem>>, vector<8x32xf32>,
      %cst_61 = arith.constant 0.000000e+00 : f32
      %188 = vector.broadcast %cst_61 : f32 to vector<8x32xf32>
      %c0_62 = arith.constant 0 : index
      %c0_63 = arith.constant 0 : index
      %189 = vector.load %arg6[%c0_62, %c0_63] : memref<8x32xf32, #tpu.memory_space<vmem>>, vector<8x32xf32>
      tpu.vector_store %arg6[%c0_62, %c0_63], %188 {strides = array<i32>} : memref<8x32xf32, #tpu.memory_space<vmem>>, vector<8x32xf32>,
    } else {
    }
    %c0 = arith.constant 0 : index
    %c0_1 = arith.constant 0 : index
    %3 = vector.load %arg5[%c0, %c0_1] : memref<8x32xf32, #tpu.memory_space<vmem>>, vector<8x32xf32>
    %c0_2 = arith.constant 0 : index
    %c0_3 = arith.constant 0 : index
    %4 = vector.load %arg6[%c0_2, %c0_3] : memref<8x32xf32, #tpu.memory_space<vmem>>, vector<8x32xf32>
    %c0_i32_4 = arith.constant 0 : i32
    %5 = arith.index_cast %c0_i32_4 : i32 to index
    %c0_5 = arith.constant 0 : index
    %c0_6 = arith.constant 0 : index
    %6 = vector.load %arg2[%5, %c0_5, %c0_6] : memref<8x8x128xf32, #tpu.memory_space<vmem>>, vector<1x8x128xf32>
    %7 = vector.shape_cast %6 : vector<1x8x128xf32> to vector<8x128xf32>
    %c0_7 = arith.constant 0 : index
    %c0_8 = arith.constant 0 : index
    %8 = vector.load %arg3[%c0_7, %c0_8] : memref<32x128xf32, #tpu.memory_space<vmem>>, vector<32x128xf32>
    %cst = arith.constant dense<0.000000e+00> : vector<8x128xf32>
    %9 = tpu.matmul %3, %8, %cst {dimension_numbers = #tpu.dot_dimension_numbers<[1], [0], [0], [1], [0, 0, 1, 1], [], []>} : vector<8x32xf32>, vector<32x128xf32>, vector<8x128xf32> -> vector<8x128xf32>
    %10 = arith.addf %7, %9 : vector<8x128xf32>
    %11 = vector.extract_strided_slice %10 {offsets = [0, 0], sizes = [8, 96], strides = [1, 1]} : vector<8x128xf32> to vector<8x96xf32>
    %12 = arith.negf %11 : vector<8x96xf32>
    %13 = math.exp %12 : vector<8x96xf32>
    %cst_9 = arith.constant 1.000000e+00 : f32
    %14 = vector.broadcast %cst_9 : f32 to vector<8x96xf32>
    %15 = arith.addf %14, %13 : vector<8x96xf32>
    %16 = arith.divf %14, %15 : vector<8x96xf32>
    %17 = vector.extract_strided_slice %16 {offsets = [0, 0], sizes = [8, 32], strides = [1, 1]} : vector<8x96xf32> to vector<8x32xf32>
    %18 = vector.extract_strided_slice %16 {offsets = [0, 32], sizes = [8, 32], strides = [1, 1]} : vector<8x96xf32> to vector<8x32xf32>
    %19 = vector.extract_strided_slice %16 {offsets = [0, 64], sizes = [8, 32], strides = [1, 1]} : vector<8x96xf32> to vector<8x32xf32>
    %20 = vector.extract_strided_slice %10 {offsets = [0, 96], sizes = [8, 32], strides = [1, 1]} : vector<8x128xf32> to vector<8x32xf32>
    %21 = math.tanh %20 : vector<8x32xf32>
    %22 = arith.mulf %18, %4 : vector<8x32xf32>
    %23 = arith.mulf %17, %21 : vector<8x32xf32>
    %24 = arith.addf %22, %23 : vector<8x32xf32>
    %25 = math.tanh %24 : vector<8x32xf32>
    %26 = arith.mulf %19, %25 : vector<8x32xf32>
    %c1_i32 = arith.constant 1 : i32
    %27 = arith.index_cast %c1_i32 : i32 to index
    %c0_10 = arith.constant 0 : index
    %c0_11 = arith.constant 0 : index
    %28 = vector.load %arg2[%27, %c0_10, %c0_11] : memref<8x8x128xf32, #tpu.memory_space<vmem>>, vector<1x8x128xf32>
    %29 = vector.shape_cast %28 : vector<1x8x128xf32> to vector<8x128xf32>
    %c0_12 = arith.constant 0 : index
    %c0_13 = arith.constant 0 : index
    %30 = vector.load %arg3[%c0_12, %c0_13] : memref<32x128xf32, #tpu.memory_space<vmem>>, vector<32x128xf32>
    %cst_14 = arith.constant dense<0.000000e+00> : vector<8x128xf32>
    %31 = tpu.matmul %26, %30, %cst_14 {dimension_numbers = #tpu.dot_dimension_numbers<[1], [0], [0], [1], [0, 0, 1, 1], [], []>} : vector<8x32xf32>, vector<32x128xf32>, vector<8x128xf32> -> vector<8x128xf32>
    %32 = arith.addf %29, %31 : vector<8x128xf32>
    %33 = vector.extract_strided_slice %32 {offsets = [0, 0], sizes = [8, 96], strides = [1, 1]} : vector<8x128xf32> to vector<8x96xf32>
    %34 = arith.negf %33 : vector<8x96xf32>
    %35 = math.exp %34 : vector<8x96xf32>
    %cst_15 = arith.constant 1.000000e+00 : f32
    %36 = vector.broadcast %cst_15 : f32 to vector<8x96xf32>
    %37 = arith.addf %36, %35 : vector<8x96xf32>
    %38 = arith.divf %36, %37 : vector<8x96xf32>
    %39 = vector.extract_strided_slice %38 {offsets = [0, 0], sizes = [8, 32], strides = [1, 1]} : vector<8x96xf32> to vector<8x32xf32>
    %40 = vector.extract_strided_slice %38 {offsets = [0, 32], sizes = [8, 32], strides = [1, 1]} : vector<8x96xf32> to vector<8x32xf32>
    %41 = vector.extract_strided_slice %38 {offsets = [0, 64], sizes = [8, 32], strides = [1, 1]} : vector<8x96xf32> to vector<8x32xf32>
    %42 = vector.extract_strided_slice %32 {offsets = [0, 96], sizes = [8, 32], strides = [1, 1]} : vector<8x128xf32> to vector<8x32xf32>
    %43 = math.tanh %42 : vector<8x32xf32>
    %44 = arith.mulf %40, %24 : vector<8x32xf32>
    %45 = arith.mulf %39, %43 : vector<8x32xf32>
    %46 = arith.addf %44, %45 : vector<8x32xf32>
    %47 = math.tanh %46 : vector<8x32xf32>
    %48 = arith.mulf %41, %47 : vector<8x32xf32>
    %c2_i32 = arith.constant 2 : i32
    %49 = arith.index_cast %c2_i32 : i32 to index
    %c0_16 = arith.constant 0 : index
    %c0_17 = arith.constant 0 : index
    %50 = vector.load %arg2[%49, %c0_16, %c0_17] : memref<8x8x128xf32, #tpu.memory_space<vmem>>, vector<1x8x128xf32>
    %51 = vector.shape_cast %50 : vector<1x8x128xf32> to vector<8x128xf32>
    %c0_18 = arith.constant 0 : index
    %c0_19 = arith.constant 0 : index
    %52 = vector.load %arg3[%c0_18, %c0_19] : memref<32x128xf32, #tpu.memory_space<vmem>>, vector<32x128xf32>
    %cst_20 = arith.constant dense<0.000000e+00> : vector<8x128xf32>
    %53 = tpu.matmul %48, %52, %cst_20 {dimension_numbers = #tpu.dot_dimension_numbers<[1], [0], [0], [1], [0, 0, 1, 1], [], []>} : vector<8x32xf32>, vector<32x128xf32>, vector<8x128xf32> -> vector<8x128xf32>
    %54 = arith.addf %51, %53 : vector<8x128xf32>
    %55 = vector.extract_strided_slice %54 {offsets = [0, 0], sizes = [8, 96], strides = [1, 1]} : vector<8x128xf32> to vector<8x96xf32>
    %56 = arith.negf %55 : vector<8x96xf32>
    %57 = math.exp %56 : vector<8x96xf32>
    %cst_21 = arith.constant 1.000000e+00 : f32
    %58 = vector.broadcast %cst_21 : f32 to vector<8x96xf32>
    %59 = arith.addf %58, %57 : vector<8x96xf32>
    %60 = arith.divf %58, %59 : vector<8x96xf32>
    %61 = vector.extract_strided_slice %60 {offsets = [0, 0], sizes = [8, 32], strides = [1, 1]} : vector<8x96xf32> to vector<8x32xf32>
    %62 = vector.extract_strided_slice %60 {offsets = [0, 32], sizes = [8, 32], strides = [1, 1]} : vector<8x96xf32> to vector<8x32xf32>
    %63 = vector.extract_strided_slice %60 {offsets = [0, 64], sizes = [8, 32], strides = [1, 1]} : vector<8x96xf32> to vector<8x32xf32>
    %64 = vector.extract_strided_slice %54 {offsets = [0, 96], sizes = [8, 32], strides = [1, 1]} : vector<8x128xf32> to vector<8x32xf32>
    %65 = math.tanh %64 : vector<8x32xf32>
    %66 = arith.mulf %62, %46 : vector<8x32xf32>
    %67 = arith.mulf %61, %65 : vector<8x32xf32>
    %68 = arith.addf %66, %67 : vector<8x32xf32>
    %69 = math.tanh %68 : vector<8x32xf32>
    %70 = arith.mulf %63, %69 : vector<8x32xf32>
    %c3_i32 = arith.constant 3 : i32
    %71 = arith.index_cast %c3_i32 : i32 to index
    %c0_22 = arith.constant 0 : index
    %c0_23 = arith.constant 0 : index
    %72 = vector.load %arg2[%71, %c0_22, %c0_23] : memref<8x8x128xf32, #tpu.memory_space<vmem>>, vector<1x8x128xf32>
    %73 = vector.shape_cast %72 : vector<1x8x128xf32> to vector<8x128xf32>
    %c0_24 = arith.constant 0 : index
    %c0_25 = arith.constant 0 : index
    %74 = vector.load %arg3[%c0_24, %c0_25] : memref<32x128xf32, #tpu.memory_space<vmem>>, vector<32x128xf32>
    %cst_26 = arith.constant dense<0.000000e+00> : vector<8x128xf32>
    %75 = tpu.matmul %70, %74, %cst_26 {dimension_numbers = #tpu.dot_dimension_numbers<[1], [0], [0], [1], [0, 0, 1, 1], [], []>} : vector<8x32xf32>, vector<32x128xf32>, vector<8x128xf32> -> vector<8x128xf32>
    %76 = arith.addf %73, %75 : vector<8x128xf32>
    %77 = vector.extract_strided_slice %76 {offsets = [0, 0], sizes = [8, 96], strides = [1, 1]} : vector<8x128xf32> to vector<8x96xf32>
    %78 = arith.negf %77 : vector<8x96xf32>
    %79 = math.exp %78 : vector<8x96xf32>
    %cst_27 = arith.constant 1.000000e+00 : f32
    %80 = vector.broadcast %cst_27 : f32 to vector<8x96xf32>
    %81 = arith.addf %80, %79 : vector<8x96xf32>
    %82 = arith.divf %80, %81 : vector<8x96xf32>
    %83 = vector.extract_strided_slice %82 {offsets = [0, 0], sizes = [8, 32], strides = [1, 1]} : vector<8x96xf32> to vector<8x32xf32>
    %84 = vector.extract_strided_slice %82 {offsets = [0, 32], sizes = [8, 32], strides = [1, 1]} : vector<8x96xf32> to vector<8x32xf32>
    %85 = vector.extract_strided_slice %82 {offsets = [0, 64], sizes = [8, 32], strides = [1, 1]} : vector<8x96xf32> to vector<8x32xf32>
    %86 = vector.extract_strided_slice %76 {offsets = [0, 96], sizes = [8, 32], strides = [1, 1]} : vector<8x128xf32> to vector<8x32xf32>
    %87 = math.tanh %86 : vector<8x32xf32>
    %88 = arith.mulf %84, %68 : vector<8x32xf32>
    %89 = arith.mulf %83, %87 : vector<8x32xf32>
    %90 = arith.addf %88, %89 : vector<8x32xf32>
    %91 = math.tanh %90 : vector<8x32xf32>
    %92 = arith.mulf %85, %91 : vector<8x32xf32>
    %c4_i32 = arith.constant 4 : i32
    %93 = arith.index_cast %c4_i32 : i32 to index
    %c0_28 = arith.constant 0 : index
    %c0_29 = arith.constant 0 : index
    %94 = vector.load %arg2[%93, %c0_28, %c0_29] : memref<8x8x128xf32, #tpu.memory_space<vmem>>, vector<1x8x128xf32>
    %95 = vector.shape_cast %94 : vector<1x8x128xf32> to vector<8x128xf32>
    %c0_30 = arith.constant 0 : index
    %c0_31 = arith.constant 0 : index
    %96 = vector.load %arg3[%c0_30, %c0_31] : memref<32x128xf32, #tpu.memory_space<vmem>>, vector<32x128xf32>
    %cst_32 = arith.constant dense<0.000000e+00> : vector<8x128xf32>
    %97 = tpu.matmul %92, %96, %cst_32 {dimension_numbers = #tpu.dot_dimension_numbers<[1], [0], [0], [1], [0, 0, 1, 1], [], []>} : vector<8x32xf32>, vector<32x128xf32>, vector<8x128xf32> -> vector<8x128xf32>
    %98 = arith.addf %95, %97 : vector<8x128xf32>
    %99 = vector.extract_strided_slice %98 {offsets = [0, 0], sizes = [8, 96], strides = [1, 1]} : vector<8x128xf32> to vector<8x96xf32>
    %100 = arith.negf %99 : vector<8x96xf32>
    %101 = math.exp %100 : vector<8x96xf32>
    %cst_33 = arith.constant 1.000000e+00 : f32
    %102 = vector.broadcast %cst_33 : f32 to vector<8x96xf32>
    %103 = arith.addf %102, %101 : vector<8x96xf32>
    %104 = arith.divf %102, %103 : vector<8x96xf32>
    %105 = vector.extract_strided_slice %104 {offsets = [0, 0], sizes = [8, 32], strides = [1, 1]} : vector<8x96xf32> to vector<8x32xf32>
    %106 = vector.extract_strided_slice %104 {offsets = [0, 32], sizes = [8, 32], strides = [1, 1]} : vector<8x96xf32> to vector<8x32xf32>
    %107 = vector.extract_strided_slice %104 {offsets = [0, 64], sizes = [8, 32], strides = [1, 1]} : vector<8x96xf32> to vector<8x32xf32>
    %108 = vector.extract_strided_slice %98 {offsets = [0, 96], sizes = [8, 32], strides = [1, 1]} : vector<8x128xf32> to vector<8x32xf32>
    %109 = math.tanh %108 : vector<8x32xf32>
    %110 = arith.mulf %106, %90 : vector<8x32xf32>
    %111 = arith.mulf %105, %109 : vector<8x32xf32>
    %112 = arith.addf %110, %111 : vector<8x32xf32>
    %113 = math.tanh %112 : vector<8x32xf32>
    %114 = arith.mulf %107, %113 : vector<8x32xf32>
    %c5_i32 = arith.constant 5 : i32
    %115 = arith.index_cast %c5_i32 : i32 to index
    %c0_34 = arith.constant 0 : index
    %c0_35 = arith.constant 0 : index
    %116 = vector.load %arg2[%115, %c0_34, %c0_35] : memref<8x8x128xf32, #tpu.memory_space<vmem>>, vector<1x8x128xf32>
    %117 = vector.shape_cast %116 : vector<1x8x128xf32> to vector<8x128xf32>
    %c0_36 = arith.constant 0 : index
    %c0_37 = arith.constant 0 : index
    %118 = vector.load %arg3[%c0_36, %c0_37] : memref<32x128xf32, #tpu.memory_space<vmem>>, vector<32x128xf32>
    %cst_38 = arith.constant dense<0.000000e+00> : vector<8x128xf32>
    %119 = tpu.matmul %114, %118, %cst_38 {dimension_numbers = #tpu.dot_dimension_numbers<[1], [0], [0], [1], [0, 0, 1, 1], [], []>} : vector<8x32xf32>, vector<32x128xf32>, vector<8x128xf32> -> vector<8x128xf32>
    %120 = arith.addf %117, %119 : vector<8x128xf32>
    %121 = vector.extract_strided_slice %120 {offsets = [0, 0], sizes = [8, 96], strides = [1, 1]} : vector<8x128xf32> to vector<8x96xf32>
    %122 = arith.negf %121 : vector<8x96xf32>
    %123 = math.exp %122 : vector<8x96xf32>
    %cst_39 = arith.constant 1.000000e+00 : f32
    %124 = vector.broadcast %cst_39 : f32 to vector<8x96xf32>
    %125 = arith.addf %124, %123 : vector<8x96xf32>
    %126 = arith.divf %124, %125 : vector<8x96xf32>
    %127 = vector.extract_strided_slice %126 {offsets = [0, 0], sizes = [8, 32], strides = [1, 1]} : vector<8x96xf32> to vector<8x32xf32>
    %128 = vector.extract_strided_slice %126 {offsets = [0, 32], sizes = [8, 32], strides = [1, 1]} : vector<8x96xf32> to vector<8x32xf32>
    %129 = vector.extract_strided_slice %126 {offsets = [0, 64], sizes = [8, 32], strides = [1, 1]} : vector<8x96xf32> to vector<8x32xf32>
    %130 = vector.extract_strided_slice %120 {offsets = [0, 96], sizes = [8, 32], strides = [1, 1]} : vector<8x128xf32> to vector<8x32xf32>
    %131 = math.tanh %130 : vector<8x32xf32>
    %132 = arith.mulf %128, %112 : vector<8x32xf32>
    %133 = arith.mulf %127, %131 : vector<8x32xf32>
    %134 = arith.addf %132, %133 : vector<8x32xf32>
    %135 = math.tanh %134 : vector<8x32xf32>
    %136 = arith.mulf %129, %135 : vector<8x32xf32>
    %c6_i32 = arith.constant 6 : i32
    %137 = arith.index_cast %c6_i32 : i32 to index
    %c0_40 = arith.constant 0 : index
    %c0_41 = arith.constant 0 : index
    %138 = vector.load %arg2[%137, %c0_40, %c0_41] : memref<8x8x128xf32, #tpu.memory_space<vmem>>, vector<1x8x128xf32>
    %139 = vector.shape_cast %138 : vector<1x8x128xf32> to vector<8x128xf32>
    %c0_42 = arith.constant 0 : index
    %c0_43 = arith.constant 0 : index
    %140 = vector.load %arg3[%c0_42, %c0_43] : memref<32x128xf32, #tpu.memory_space<vmem>>, vector<32x128xf32>
    %cst_44 = arith.constant dense<0.000000e+00> : vector<8x128xf32>
    %141 = tpu.matmul %136, %140, %cst_44 {dimension_numbers = #tpu.dot_dimension_numbers<[1], [0], [0], [1], [0, 0, 1, 1], [], []>} : vector<8x32xf32>, vector<32x128xf32>, vector<8x128xf32> -> vector<8x128xf32>
    %142 = arith.addf %139, %141 : vector<8x128xf32>
    %143 = vector.extract_strided_slice %142 {offsets = [0, 0], sizes = [8, 96], strides = [1, 1]} : vector<8x128xf32> to vector<8x96xf32>
    %144 = arith.negf %143 : vector<8x96xf32>
    %145 = math.exp %144 : vector<8x96xf32>
    %cst_45 = arith.constant 1.000000e+00 : f32
    %146 = vector.broadcast %cst_45 : f32 to vector<8x96xf32>
    %147 = arith.addf %146, %145 : vector<8x96xf32>
    %148 = arith.divf %146, %147 : vector<8x96xf32>
    %149 = vector.extract_strided_slice %148 {offsets = [0, 0], sizes = [8, 32], strides = [1, 1]} : vector<8x96xf32> to vector<8x32xf32>
    %150 = vector.extract_strided_slice %148 {offsets = [0, 32], sizes = [8, 32], strides = [1, 1]} : vector<8x96xf32> to vector<8x32xf32>
    %151 = vector.extract_strided_slice %148 {offsets = [0, 64], sizes = [8, 32], strides = [1, 1]} : vector<8x96xf32> to vector<8x32xf32>
    %152 = vector.extract_strided_slice %142 {offsets = [0, 96], sizes = [8, 32], strides = [1, 1]} : vector<8x128xf32> to vector<8x32xf32>
    %153 = math.tanh %152 : vector<8x32xf32>
    %154 = arith.mulf %150, %134 : vector<8x32xf32>
    %155 = arith.mulf %149, %153 : vector<8x32xf32>
    %156 = arith.addf %154, %155 : vector<8x32xf32>
    %157 = math.tanh %156 : vector<8x32xf32>
    %158 = arith.mulf %151, %157 : vector<8x32xf32>
    %c7_i32 = arith.constant 7 : i32
    %159 = arith.index_cast %c7_i32 : i32 to index
    %c0_46 = arith.constant 0 : index
    %c0_47 = arith.constant 0 : index
    %160 = vector.load %arg2[%159, %c0_46, %c0_47] : memref<8x8x128xf32, #tpu.memory_space<vmem>>, vector<1x8x128xf32>
    %161 = vector.shape_cast %160 : vector<1x8x128xf32> to vector<8x128xf32>
    %c0_48 = arith.constant 0 : index
    %c0_49 = arith.constant 0 : index
    %162 = vector.load %arg3[%c0_48, %c0_49] : memref<32x128xf32, #tpu.memory_space<vmem>>, vector<32x128xf32>
    %cst_50 = arith.constant dense<0.000000e+00> : vector<8x128xf32>
    %163 = tpu.matmul %158, %162, %cst_50 {dimension_numbers = #tpu.dot_dimension_numbers<[1], [0], [0], [1], [0, 0, 1, 1], [], []>} : vector<8x32xf32>, vector<32x128xf32>, vector<8x128xf32> -> vector<8x128xf32>
    %164 = arith.addf %161, %163 : vector<8x128xf32>
    %165 = vector.extract_strided_slice %164 {offsets = [0, 0], sizes = [8, 96], strides = [1, 1]} : vector<8x128xf32> to vector<8x96xf32>
    %166 = arith.negf %165 : vector<8x96xf32>
    %167 = math.exp %166 : vector<8x96xf32>
    %cst_51 = arith.constant 1.000000e+00 : f32
    %168 = vector.broadcast %cst_51 : f32 to vector<8x96xf32>
    %169 = arith.addf %168, %167 : vector<8x96xf32>
    %170 = arith.divf %168, %169 : vector<8x96xf32>
    %171 = vector.extract_strided_slice %170 {offsets = [0, 0], sizes = [8, 32], strides = [1, 1]} : vector<8x96xf32> to vector<8x32xf32>
    %172 = vector.extract_strided_slice %170 {offsets = [0, 32], sizes = [8, 32], strides = [1, 1]} : vector<8x96xf32> to vector<8x32xf32>
    %173 = vector.extract_strided_slice %170 {offsets = [0, 64], sizes = [8, 32], strides = [1, 1]} : vector<8x96xf32> to vector<8x32xf32>
    %174 = vector.extract_strided_slice %164 {offsets = [0, 96], sizes = [8, 32], strides = [1, 1]} : vector<8x128xf32> to vector<8x32xf32>
    %175 = math.tanh %174 : vector<8x32xf32>
    %176 = arith.mulf %172, %156 : vector<8x32xf32>
    %177 = arith.mulf %171, %175 : vector<8x32xf32>
    %178 = arith.addf %176, %177 : vector<8x32xf32>
    %179 = math.tanh %178 : vector<8x32xf32>
    %180 = arith.mulf %173, %179 : vector<8x32xf32>
    %c8_i32 = arith.constant 8 : i32
    %c0_52 = arith.constant 0 : index
    %c0_53 = arith.constant 0 : index
    %181 = vector.load %arg5[%c0_52, %c0_53] : memref<8x32xf32, #tpu.memory_space<vmem>>, vector<8x32xf32>
    tpu.vector_store %arg5[%c0_52, %c0_53], %180 {strides = array<i32>} : memref<8x32xf32, #tpu.memory_space<vmem>>, vector<8x32xf32>,
    %c0_54 = arith.constant 0 : index
    %c0_55 = arith.constant 0 : index
    %182 = vector.load %arg6[%c0_54, %c0_55] : memref<8x32xf32, #tpu.memory_space<vmem>>, vector<8x32xf32>
    tpu.vector_store %arg6[%c0_54, %c0_55], %178 {strides = array<i32>} : memref<8x32xf32, #tpu.memory_space<vmem>>, vector<8x32xf32>,
    %c0_i32_56 = arith.constant 0 : i32
    %183 = arith.cmpi eq, %arg1, %c0_i32_56 : i32
    %184 = arith.extui %183 : i1 to i32
    %c0_i32_57 = arith.constant 0 : i32
    %185 = arith.cmpi ne, %184, %c0_i32_57 : i32
    scf.if %185 {
      %c0_58 = arith.constant 0 : index
      %c0_59 = arith.constant 0 : index
      %186 = vector.load %arg4[%c0_58, %c0_59] : memref<8x32xf32, #tpu.memory_space<vmem>>, vector<8x32xf32>
      tpu.vector_store %arg4[%c0_58, %c0_59], %180 {strides = array<i32>} : memref<8x32xf32, #tpu.memory_space<vmem>>, vector<8x32xf32>,
    } else {
    }
    return
  }
  func.func @transform_0(%arg0: i32, %arg1: i32) -> (i32, i32, i32) {
    %c0_i32 = arith.constant 0 : i32
    %c0_i32_0 = arith.constant 0 : i32
    return %arg1, %arg0, %c0_i32 : i32, i32, i32
  }
  func.func @transform_1(%arg0: i32, %arg1: i32) -> (i32, i32) {
    %c0_i32 = arith.constant 0 : i32
    %c0_i32_0 = arith.constant 0 : i32
    %c0_i32_1 = arith.constant 0 : i32
    return %c0_i32, %c0_i32_0 : i32, i32
  }
  func.func @transform_2(%arg0: i32, %arg1: i32) -> (i32, i32) {
    %c0_i32 = arith.constant 0 : i32
    %c0_i32_0 = arith.constant 0 : i32
    return %arg0, %c0_i32 : i32, i32
  }
}

</mosaic_0001>

<llo_original>
// kernel: tpu_custom_call.1
$region0: #{tpu_custom_call.1}
  #allocation0 [shape = 'u32[]', space=smem, size = 0x4, offset = 0x4, fixed_abs, tag = 'smem constant byte address 0x4 - core index']
  #allocation1 [shape = 'u32[72,128]{1,0:T(1,128)}', space=vmem, size = 0x9000, scoped, tag = 'internal scratch']
  #allocation2 [shape = 'f32[8,32]{1,0:T(8,128)}', space=vmem, size = 0x1000, scoped, tag = 'scratch operand']
  #allocation3 [shape = 'f32[8,32]{1,0:T(8,128)}', space=vmem, size = 0x1000, scoped, tag = 'scratch operand']
  %s0 = inlined_call_operand.hbm [shape: f32[8,8,128], index: 0, kind: input, shape index: {}]
  %s1 = inlined_call_operand.hbm [shape: f32[32,128], index: 1, kind: input, shape index: {}]
  %s2 = inlined_call_operand.hbm [shape: f32[8,32], index: 2, kind: output, shape index: {}]
  %s3 = sld [smem:[#allocation0]]
  $region34: #{tpu_custom_call.1} parent=0
    _
  %s5 = ssub.s32 1, %s3
  %s6 = scalar_select 0, %s5, %s3
  $region1: #{tpu_custom_call.1} parent=0
    #allocation4 [shape = 'u8[32768]{0}', space=vmem, size = 0x8000, scoped, tag = 'input window, operand 0, single buffered']
    #allocation5 [shape = 's32[1]{0}', space=sflag, size = 0x4, scoped, tag = 'scoped memory for tpu_custom_call.1']
    #allocation6 [shape = 's32[1]{0}', space=sflag, size = 0x4, scoped, tag = 'scoped memory for tpu_custom_call.1']
    #allocation7 [shape = 'u8[16384]{0}', space=vmem, size = 0x4000, scoped, tag = 'input window, operand 1, single buffered']
    #allocation8 [shape = 's32[1]{0}', space=sflag, size = 0x4, scoped, tag = 'scoped memory for tpu_custom_call.1']
    #allocation9 [shape = 'u8[4096]{0}', space=vmem, size = 0x1000, scoped, tag = 'output window, operand 0, single buffered']
    %7 = vsyncpa [#allocation5], 0
    %8 = vsyncpa [#allocation8], 0
    %9 = vsyncpa [#allocation6], 0
    // Predicated region
    $region2: #{tpu_custom_call.1} parent=1 // pred_check
      _
    $region3: #{tpu_custom_call.1} parent=1 // pred_check_branch
      %11 = sbr.rel (0) target = $region5
    $region4: #{tpu_custom_call.1} parent=1 // pred_region
      %13 = vsyncadd [#allocation5], 0
      %s14 = sshll.u32 %s0, 4
      %s15 = int_to_ptr.hbm [resolvable:$true] %s14
      %s16 = sshll.u32 [#allocation4], 4
      %s17 = int_to_ptr.vmem [resolvable:$true] %s16
      %22 = dma.hbm_to_vmem [thread:$0]  %s15, 1024, %s17, [#allocation5], 128, 128, 8
    $region5: #{tpu_custom_call.1} parent=1 // pred_fallthru
      _
    // Predicated region
    $region6: #{tpu_custom_call.1} parent=1 // pred_check
      _
    $region7: #{tpu_custom_call.1} parent=1 // pred_check_branch
      %24 = sbr.rel (0) target = $region9
    $region8: #{tpu_custom_call.1} parent=1 // pred_region
      %26 = vsyncadd [#allocation8], 0
      %s27 = sshll.u32 %s1, 4
      %s28 = int_to_ptr.hbm [resolvable:$true] %s27
      %s29 = sshll.u32 [#allocation7], 4
      %s30 = int_to_ptr.vmem [resolvable:$true] %s29
      %35 = dma.hbm_to_vmem [thread:$0]  %s28, 512, %s30, [#allocation8], 128, 128, 8
    $region9: #{tpu_custom_call.1} parent=1 // pred_fallthru
      _
    // Predicated region
    $region10: #{tpu_custom_call.1} parent=1 // pred_check
      _
    $region11: #{tpu_custom_call.1} parent=1 // pred_check_branch
      %37 = sbr.rel (0) target = $region13
    $region12: #{tpu_custom_call.1} parent=1 // pred_region
      %39 = dma.done [#allocation5], 1024
    $region13: #{tpu_custom_call.1} parent=1 // pred_fallthru
      _
    // Predicated region
    $region14: #{tpu_custom_call.1} parent=1 // pred_check
      _
    $region15: #{tpu_custom_call.1} parent=1 // pred_check_branch
      %41 = sbr.rel (0) target = $region17
    $region16: #{tpu_custom_call.1} parent=1 // pred_region
      %43 = dma.done [#allocation8], 512
    $region17: #{tpu_custom_call.1} parent=1 // pred_fallthru
      _
    %p44 = scmp.eq.s32.totalorder 0, 0
    // Predicated region
    $region18: #{tpu_custom_call.1} parent=1 // pred_check
      %p45 = pneg %p44
    $region19: #{tpu_custom_call.1} parent=1 // pred_check_branch
      %47 = sbr.rel (%p45) target = $region21
    $region20: #{tpu_custom_call.1} parent=1 // pred_region
      %vm48 = vcmask 261120
      %49 = vst.msk [vmem:[#allocation2] sm:$0xff] %vm48, 0.0
      %50 = vst.msk [vmem:[#allocation3] sm:$0xff] %vm48, 0.0
    $region21: #{tpu_custom_call.1} parent=1 // pred_fallthru
      _
    %v51 = vld [vmem:[#allocation2] sm:$0xff]
    %v52 = vld [vmem:[#allocation3] sm:$0xff]
    %v53 = vld [vmem:[#allocation4] sm:$0xff]
    %v54 = vld [vmem:[#allocation7] sm:$0xff]
    %v55 = vld [vmem:[#allocation7 + $0x8] sm:$0xff]
    %v56 = vld [vmem:[#allocation7 + $0x10] sm:$0xff]
    %v57 = vld [vmem:[#allocation7 + $0x18] sm:$0xff]
    %vm58 = vcmask 261120
    %v60 = vsel %vm58, %v51, 0
    %62 = vmatpush.msra.mxu0 0.0
    %63 = vmatpush.msra.mxu0 0.0
    %64 = vmatpush.msra.mxu0 0.0
    %65 = vmatpush.msra.mxu0 0.0
    %66 = vmatpush.msra.mxu0 0.0
    %67 = vmatpush.msra.mxu0 0.0
    %68 = vmatpush.msra.mxu0 0.0
    %69 = vmatpush.msra.mxu0 0.0
    %70 = vmatpush.msra.mxu0 0.0
    %71 = vmatpush.msra.mxu0 0.0
    %72 = vmatpush.msra.mxu0 0.0
    %73 = vmatpush.msra.mxu0 0.0
    %74 = vmatpush.msra.mxu0 %v57
    %75 = vmatpush.msra.mxu0 %v56
    %76 = vmatpush.msra.mxu0 %v55
    %77 = vmatpush.msra.mxu0 %v54
    %78 = vmatmul.f32.gmra.mxu0 %v60
    %v79 = vpop.f32.mrf.mxu0
    %v80 = vadd.f32 0.0, %v79
    %81 = vdwg.mxu0
    %v82 = vadd.f32 %v53, %v80
    %v83 = vxor.u32 %v82, 2147483648
    %v84 = vmul.f32 %v83, 1.442695
    %v85 = vpow.pop %v84
    %v86 = vadd.f32 %v85, 1.0
    %v87 = vrcp.pop %v86
    %v88 = vmul.f32 %v86, %v87
    %v89 = vsub.f32 1.0, %v88
    %v90 = vmul.f32 %v87, %v89
    %v91 = vadd.f32 %v87, %v90
    %vm92 = vweird.f32 %v86
    %vm93 = vweird.f32 %v87
    %vm94 = vmor %vm92, %vm93
    %v95 = vsel %vm94, %v87, %v91
    %v96 = vand.u32 2147483647, %v86
    %vm97 = vcmp.eq.f32.partialorder %v96, 8.507059e+37
    %v98 = vand.u32 %v86, 2147483648
    %v99 = vor.u32 1.1754944e-38, %v98
    %v100 = vsel %vm97, %v99, %v95
    %v101 = vmul.f32 1.0, %v100
    %v102 = vtanh.pop %v82
    %104 = vrot.lane.b32.xlu0 %v52, 32
    %v105 = vpop.permute.xlu0 %104
    %v107 = vmul.f32 %v101, %v105
    %109 = vrot.lane.b32.xlu0 %v102, 32
    %v110 = vpop.permute.xlu0 %109
    %v112 = vmul.f32 %v101, %v110
    %114 = vrot.lane.b32.xlu0 %v112, 32
    %v115 = vpop.permute.xlu0 %114
    %v117 = vadd.f32 %v107, %v115
    %v118 = vtanh.pop %v117
    %120 = vrot.lane.b32.xlu0 %v118, 32
    %v121 = vpop.permute.xlu0 %120
    %v123 = vmul.f32 %v101, %v121
    %s124 = scalar_lea.vmem [#allocation4], 8
    %v125 = vld [vmem:[%s124] sm:$0xff]
    %127 = vrot.lane.b32.xlu0 %v123, 64
    %v128 = vpop.permute.xlu0 %127
    %v129 = vsel %vm58, %v128, 0
    %131 = vmatpush.msra.mxu0 0.0
    %132 = vmatpush.msra.mxu0 0.0
    %133 = vmatpush.msra.mxu0 0.0
    %134 = vmatpush.msra.mxu0 0.0
    %135 = vmatpush.msra.mxu0 0.0
    %136 = vmatpush.msra.mxu0 0.0
    %137 = vmatpush.msra.mxu0 0.0
    %138 = vmatpush.msra.mxu0 0.0
    %139 = vmatpush.msra.mxu0 0.0
    %140 = vmatpush.msra.mxu0 0.0
    %141 = vmatpush.msra.mxu0 0.0
    %142 = vmatpush.msra.mxu0 0.0
    %143 = vmatpush.msra.mxu0 %v57
    %144 = vmatpush.msra.mxu0 %v56
    %145 = vmatpush.msra.mxu0 %v55
    %146 = vmatpush.msra.mxu0 %v54
    %147 = vmatmul.f32.gmra.mxu0 %v129
    %v148 = vpop.f32.mrf.mxu0
    %v149 = vadd.f32 0.0, %v148
    %150 = vdwg.mxu0
    %v151 = vadd.f32 %v125, %v149
    %v152 = vxor.u32 %v151, 2147483648
    %v153 = vmul.f32 %v152, 1.442695
    %v154 = vpow.pop %v153
    %v155 = vadd.f32 %v154, 1.0
    %v156 = vrcp.pop %v155
    %v157 = vmul.f32 %v155, %v156
    %v158 = vsub.f32 1.0, %v157
    %v159 = vmul.f32 %v156, %v158
    %v160 = vadd.f32 %v156, %v159
    %vm161 = vweird.f32 %v155
    %vm162 = vweird.f32 %v156
    %vm163 = vmor %vm161, %vm162
    %v164 = vsel %vm163, %v156, %v160
    %v165 = vand.u32 2147483647, %v155
    %vm166 = vcmp.eq.f32.partialorder %v165, 8.507059e+37
    %v167 = vand.u32 %v155, 2147483648
    %v168 = vor.u32 1.1754944e-38, %v167
    %v169 = vsel %vm166, %v168, %v164
    %v170 = vmul.f32 1.0, %v169
    %v171 = vtanh.pop %v151
    %v172 = vmul.f32 %v170, %v117
    %174 = vrot.lane.b32.xlu0 %v171, 32
    %v175 = vpop.permute.xlu0 %174
    %v177 = vmul.f32 %v170, %v175
    %179 = vrot.lane.b32.xlu0 %v177, 32
    %v180 = vpop.permute.xlu0 %179
    %v182 = vadd.f32 %v172, %v180
    %v183 = vtanh.pop %v182
    %185 = vrot.lane.b32.xlu0 %v183, 32
    %v186 = vpop.permute.xlu0 %185
    %v188 = vmul.f32 %v170, %v186
    %s189 = scalar_lea.vmem [#allocation4], 16
    %v190 = vld [vmem:[%s189] sm:$0xff]
    %192 = vrot.lane.b32.xlu0 %v188, 64
    %v193 = vpop.permute.xlu0 %192
    %v194 = vsel %vm58, %v193, 0
    %196 = vmatpush.msra.mxu0 0.0
    %197 = vmatpush.msra.mxu0 0.0
    %198 = vmatpush.msra.mxu0 0.0
    %199 = vmatpush.msra.mxu0 0.0
    %200 = vmatpush.msra.mxu0 0.0
    %201 = vmatpush.msra.mxu0 0.0
    %202 = vmatpush.msra.mxu0 0.0
    %203 = vmatpush.msra.mxu0 0.0
    %204 = vmatpush.msra.mxu0 0.0
    %205 = vmatpush.msra.mxu0 0.0
    %206 = vmatpush.msra.mxu0 0.0
    %207 = vmatpush.msra.mxu0 0.0
    %208 = vmatpush.msra.mxu0 %v57
    %209 = vmatpush.msra.mxu0 %v56
    %210 = vmatpush.msra.mxu0 %v55
    %211 = vmatpush.msra.mxu0 %v54
    %212 = vmatmul.f32.gmra.mxu0 %v194
    %v213 = vpop.f32.mrf.mxu0
    %v214 = vadd.f32 0.0, %v213
    %215 = vdwg.mxu0
    %v216 = vadd.f32 %v190, %v214
    %v217 = vxor.u32 %v216, 2147483648
    %v218 = vmul.f32 %v217, 1.442695
    %v219 = vpow.pop %v218
    %v220 = vadd.f32 %v219, 1.0
    %v221 = vrcp.pop %v220
    %v222 = vmul.f32 %v220, %v221
    %v223 = vsub.f32 1.0, %v222
    %v224 = vmul.f32 %v221, %v223
    %v225 = vadd.f32 %v221, %v224
    %vm226 = vweird.f32 %v220
    %vm227 = vweird.f32 %v221
    %vm228 = vmor %vm226, %vm227
    %v229 = vsel %vm228, %v221, %v225
    %v230 = vand.u32 2147483647, %v220
    %vm231 = vcmp.eq.f32.partialorder %v230, 8.507059e+37
    %v232 = vand.u32 %v220, 2147483648
    %v233 = vor.u32 1.1754944e-38, %v232
    %v234 = vsel %vm231, %v233, %v229
    %v235 = vmul.f32 1.0, %v234
    %v236 = vtanh.pop %v216
    %v237 = vmul.f32 %v235, %v182
    %239 = vrot.lane.b32.xlu0 %v236, 32
    %v240 = vpop.permute.xlu0 %239
    %v242 = vmul.f32 %v235, %v240
    %244 = vrot.lane.b32.xlu0 %v242, 32
    %v245 = vpop.permute.xlu0 %244
    %v247 = vadd.f32 %v237, %v245
    %v248 = vtanh.pop %v247
    %250 = vrot.lane.b32.xlu0 %v248, 32
    %v251 = vpop.permute.xlu0 %250
    %v253 = vmul.f32 %v235, %v251
    %s254 = scalar_lea.vmem [#allocation4], 24
    %v255 = vld [vmem:[%s254] sm:$0xff]
    %257 = vrot.lane.b32.xlu0 %v253, 64
    %v258 = vpop.permute.xlu0 %257
    %v259 = vsel %vm58, %v258, 0
    %261 = vmatpush.msra.mxu0 0.0
    %262 = vmatpush.msra.mxu0 0.0
    %263 = vmatpush.msra.mxu0 0.0
    %264 = vmatpush.msra.mxu0 0.0
    %265 = vmatpush.msra.mxu0 0.0
    %266 = vmatpush.msra.mxu0 0.0
    %267 = vmatpush.msra.mxu0 0.0
    %268 = vmatpush.msra.mxu0 0.0
    %269 = vmatpush.msra.mxu0 0.0
    %270 = vmatpush.msra.mxu0 0.0
    %271 = vmatpush.msra.mxu0 0.0
    %272 = vmatpush.msra.mxu0 0.0
    %273 = vmatpush.msra.mxu0 %v57
    %274 = vmatpush.msra.mxu0 %v56
    %275 = vmatpush.msra.mxu0 %v55
    %276 = vmatpush.msra.mxu0 %v54
    %277 = vmatmul.f32.gmra.mxu0 %v259
    %v278 = vpop.f32.mrf.mxu0
    %v279 = vadd.f32 0.0, %v278
    %280 = vdwg.mxu0
    %v281 = vadd.f32 %v255, %v279
    %v282 = vxor.u32 %v281, 2147483648
    %v283 = vmul.f32 %v282, 1.442695
    %v284 = vpow.pop %v283
    %v285 = vadd.f32 %v284, 1.0
    %v286 = vrcp.pop %v285
    %v287 = vmul.f32 %v285, %v286
    %v288 = vsub.f32 1.0, %v287
    %v289 = vmul.f32 %v286, %v288
    %v290 = vadd.f32 %v286, %v289
    %vm291 = vweird.f32 %v285
    %vm292 = vweird.f32 %v286
    %vm293 = vmor %vm291, %vm292
    %v294 = vsel %vm293, %v286, %v290
    %v295 = vand.u32 2147483647, %v285
    %vm296 = vcmp.eq.f32.partialorder %v295, 8.507059e+37
    %v297 = vand.u32 %v285, 2147483648
    %v298 = vor.u32 1.1754944e-38, %v297
    %v299 = vsel %vm296, %v298, %v294
    %v300 = vmul.f32 1.0, %v299
    %v301 = vtanh.pop %v281
    %v302 = vmul.f32 %v300, %v247
    %304 = vrot.lane.b32.xlu0 %v301, 32
    %v305 = vpop.permute.xlu0 %304
    %v307 = vmul.f32 %v300, %v305
    %309 = vrot.lane.b32.xlu0 %v307, 32
    %v310 = vpop.permute.xlu0 %309
    %v312 = vadd.f32 %v302, %v310
    %v313 = vtanh.pop %v312
    %315 = vrot.lane.b32.xlu0 %v313, 32
    %v316 = vpop.permute.xlu0 %315
    %v318 = vmul.f32 %v300, %v316
    %s319 = scalar_lea.vmem [#allocation4], 32
    %v320 = vld [vmem:[%s319] sm:$0xff]
    %322 = vrot.lane.b32.xlu0 %v318, 64
    %v323 = vpop.permute.xlu0 %322
    %v324 = vsel %vm58, %v323, 0
    %326 = vmatpush.msra.mxu0 0.0
    %327 = vmatpush.msra.mxu0 0.0
    %328 = vmatpush.msra.mxu0 0.0
    %329 = vmatpush.msra.mxu0 0.0
    %330 = vmatpush.msra.mxu0 0.0
    %331 = vmatpush.msra.mxu0 0.0
    %332 = vmatpush.msra.mxu0 0.0
    %333 = vmatpush.msra.mxu0 0.0
    %334 = vmatpush.msra.mxu0 0.0
    %335 = vmatpush.msra.mxu0 0.0
    %336 = vmatpush.msra.mxu0 0.0
    %337 = vmatpush.msra.mxu0 0.0
    %338 = vmatpush.msra.mxu0 %v57
    %339 = vmatpush.msra.mxu0 %v56
    %340 = vmatpush.msra.mxu0 %v55
    %341 = vmatpush.msra.mxu0 %v54
    %342 = vmatmul.f32.gmra.mxu0 %v324
    %v343 = vpop.f32.mrf.mxu0
    %v344 = vadd.f32 0.0, %v343
    %345 = vdwg.mxu0
    %v346 = vadd.f32 %v320, %v344
    %v347 = vxor.u32 %v346, 2147483648
    %v348 = vmul.f32 %v347, 1.442695
    %v349 = vpow.pop %v348
    %v350 = vadd.f32 %v349, 1.0
    %v351 = vrcp.pop %v350
    %v352 = vmul.f32 %v350, %v351
    %v353 = vsub.f32 1.0, %v352
    %v354 = vmul.f32 %v351, %v353
    %v355 = vadd.f32 %v351, %v354
    %vm356 = vweird.f32 %v350
    %vm357 = vweird.f32 %v351
    %vm358 = vmor %vm356, %vm357
    %v359 = vsel %vm358, %v351, %v355
    %v360 = vand.u32 2147483647, %v350
    %vm361 = vcmp.eq.f32.partialorder %v360, 8.507059e+37
    %v362 = vand.u32 %v350, 2147483648
    %v363 = vor.u32 1.1754944e-38, %v362
    %v364 = vsel %vm361, %v363, %v359
    %v365 = vmul.f32 1.0, %v364
    %v366 = vtanh.pop %v346
    %v367 = vmul.f32 %v365, %v312
    %369 = vrot.lane.b32.xlu0 %v366, 32
    %v370 = vpop.permute.xlu0 %369
    %v372 = vmul.f32 %v365, %v370
    %374 = vrot.lane.b32.xlu0 %v372, 32
    %v375 = vpop.permute.xlu0 %374
    %v377 = vadd.f32 %v367, %v375
    %v378 = vtanh.pop %v377
    %380 = vrot.lane.b32.xlu0 %v378, 32
    %v381 = vpop.permute.xlu0 %380
    %v383 = vmul.f32 %v365, %v381
    %s384 = scalar_lea.vmem [#allocation4], 40
    %v385 = vld [vmem:[%s384] sm:$0xff]
    %387 = vrot.lane.b32.xlu0 %v383, 64
    %v388 = vpop.permute.xlu0 %387
    %v389 = vsel %vm58, %v388, 0
    %391 = vmatpush.msra.mxu0 0.0
    %392 = vmatpush.msra.mxu0 0.0
    %393 = vmatpush.msra.mxu0 0.0
    %394 = vmatpush.msra.mxu0 0.0
    %395 = vmatpush.msra.mxu0 0.0
    %396 = vmatpush.msra.mxu0 0.0
    %397 = vmatpush.msra.mxu0 0.0
    %398 = vmatpush.msra.mxu0 0.0
    %399 = vmatpush.msra.mxu0 0.0
    %400 = vmatpush.msra.mxu0 0.0
    %401 = vmatpush.msra.mxu0 0.0
    %402 = vmatpush.msra.mxu0 0.0
    %403 = vmatpush.msra.mxu0 %v57
    %404 = vmatpush.msra.mxu0 %v56
    %405 = vmatpush.msra.mxu0 %v55
    %406 = vmatpush.msra.mxu0 %v54
    %407 = vmatmul.f32.gmra.mxu0 %v389
    %v408 = vpop.f32.mrf.mxu0
    %v409 = vadd.f32 0.0, %v408
    %410 = vdwg.mxu0
    %v411 = vadd.f32 %v385, %v409
    %v412 = vxor.u32 %v411, 2147483648
    %v413 = vmul.f32 %v412, 1.442695
    %v414 = vpow.pop %v413
    %v415 = vadd.f32 %v414, 1.0
    %v416 = vrcp.pop %v415
    %v417 = vmul.f32 %v415, %v416
    %v418 = vsub.f32 1.0, %v417
    %v419 = vmul.f32 %v416, %v418
    %v420 = vadd.f32 %v416, %v419
    %vm421 = vweird.f32 %v415
    %vm422 = vweird.f32 %v416
    %vm423 = vmor %vm421, %vm422
    %v424 = vsel %vm423, %v416, %v420
    %v425 = vand.u32 2147483647, %v415
    %vm426 = vcmp.eq.f32.partialorder %v425, 8.507059e+37
    %v427 = vand.u32 %v415, 2147483648
    %v428 = vor.u32 1.1754944e-38, %v427
    %v429 = vsel %vm426, %v428, %v424
    %v430 = vmul.f32 1.0, %v429
    %v431 = vtanh.pop %v411
    %v432 = vmul.f32 %v430, %v377
    %434 = vrot.lane.b32.xlu0 %v431, 32
    %v435 = vpop.permute.xlu0 %434
    %v437 = vmul.f32 %v430, %v435
    %439 = vrot.lane.b32.xlu0 %v437, 32
    %v440 = vpop.permute.xlu0 %439
    %v442 = vadd.f32 %v432, %v440
    %v443 = vtanh.pop %v442
    %445 = vrot.lane.b32.xlu0 %v443, 32
    %v446 = vpop.permute.xlu0 %445
    %v448 = vmul.f32 %v430, %v446
    %s449 = scalar_lea.vmem [#allocation4], 48
    %v450 = vld [vmem:[%s449] sm:$0xff]
    %452 = vrot.lane.b32.xlu0 %v448, 64
    %v453 = vpop.permute.xlu0 %452
    %v454 = vsel %vm58, %v453, 0
    %456 = vmatpush.msra.mxu0 0.0
    %457 = vmatpush.msra.mxu0 0.0
    %458 = vmatpush.msra.mxu0 0.0
    %459 = vmatpush.msra.mxu0 0.0
    %460 = vmatpush.msra.mxu0 0.0
    %461 = vmatpush.msra.mxu0 0.0
    %462 = vmatpush.msra.mxu0 0.0
    %463 = vmatpush.msra.mxu0 0.0
    %464 = vmatpush.msra.mxu0 0.0
    %465 = vmatpush.msra.mxu0 0.0
    %466 = vmatpush.msra.mxu0 0.0
    %467 = vmatpush.msra.mxu0 0.0
    %468 = vmatpush.msra.mxu0 %v57
    %469 = vmatpush.msra.mxu0 %v56
    %470 = vmatpush.msra.mxu0 %v55
    %471 = vmatpush.msra.mxu0 %v54
    %472 = vmatmul.f32.gmra.mxu0 %v454
    %v473 = vpop.f32.mrf.mxu0
    %v474 = vadd.f32 0.0, %v473
    %475 = vdwg.mxu0
    %v476 = vadd.f32 %v450, %v474
    %v477 = vxor.u32 %v476, 2147483648
    %v478 = vmul.f32 %v477, 1.442695
    %v479 = vpow.pop %v478
    %v480 = vadd.f32 %v479, 1.0
    %v481 = vrcp.pop %v480
    %v482 = vmul.f32 %v480, %v481
    %v483 = vsub.f32 1.0, %v482
    %v484 = vmul.f32 %v481, %v483
    %v485 = vadd.f32 %v481, %v484
    %vm486 = vweird.f32 %v480
    %vm487 = vweird.f32 %v481
    %vm488 = vmor %vm486, %vm487
    %v489 = vsel %vm488, %v481, %v485
    %v490 = vand.u32 2147483647, %v480
    %vm491 = vcmp.eq.f32.partialorder %v490, 8.507059e+37
    %v492 = vand.u32 %v480, 2147483648
    %v493 = vor.u32 1.1754944e-38, %v492
    %v494 = vsel %vm491, %v493, %v489
    %v495 = vmul.f32 1.0, %v494
    %v496 = vtanh.pop %v476
    %v497 = vmul.f32 %v495, %v442
    %499 = vrot.lane.b32.xlu0 %v496, 32
    %v500 = vpop.permute.xlu0 %499
    %v502 = vmul.f32 %v495, %v500
    %504 = vrot.lane.b32.xlu0 %v502, 32
    %v505 = vpop.permute.xlu0 %504
    %v507 = vadd.f32 %v497, %v505
    %v508 = vtanh.pop %v507
    %510 = vrot.lane.b32.xlu0 %v508, 32
    %v511 = vpop.permute.xlu0 %510
    %v513 = vmul.f32 %v495, %v511
    %s514 = scalar_lea.vmem [#allocation4], 56
    %v515 = vld [vmem:[%s514] sm:$0xff]
    %517 = vrot.lane.b32.xlu0 %v513, 64
    %v518 = vpop.permute.xlu0 %517
    %v519 = vsel %vm58, %v518, 0
    %521 = vmatpush.msra.mxu0 0.0
    %522 = vmatpush.msra.mxu0 0.0
    %523 = vmatpush.msra.mxu0 0.0
    %524 = vmatpush.msra.mxu0 0.0
    %525 = vmatpush.msra.mxu0 0.0
    %526 = vmatpush.msra.mxu0 0.0
    %527 = vmatpush.msra.mxu0 0.0
    %528 = vmatpush.msra.mxu0 0.0
    %529 = vmatpush.msra.mxu0 0.0
    %530 = vmatpush.msra.mxu0 0.0
    %531 = vmatpush.msra.mxu0 0.0
    %532 = vmatpush.msra.mxu0 0.0
    %533 = vmatpush.msra.mxu0 %v57
    %534 = vmatpush.msra.mxu0 %v56
    %535 = vmatpush.msra.mxu0 %v55
    %536 = vmatpush.msra.mxu0 %v54
    %537 = vmatmul.f32.gmra.mxu0 %v519
    %v538 = vpop.f32.mrf.mxu0
    %v539 = vadd.f32 0.0, %v538
    %540 = vdwg.mxu0
    %v541 = vadd.f32 %v515, %v539
    %v542 = vxor.u32 %v541, 2147483648
    %v543 = vmul.f32 %v542, 1.442695
    %v544 = vpow.pop %v543
    %v545 = vadd.f32 %v544, 1.0
    %v546 = vrcp.pop %v545
    %v547 = vmul.f32 %v545, %v546
    %v548 = vsub.f32 1.0, %v547
    %v549 = vmul.f32 %v546, %v548
    %v550 = vadd.f32 %v546, %v549
    %vm551 = vweird.f32 %v545
    %vm552 = vweird.f32 %v546
    %vm553 = vmor %vm551, %vm552
    %v554 = vsel %vm553, %v546, %v550
    %v555 = vand.u32 2147483647, %v545
    %vm556 = vcmp.eq.f32.partialorder %v555, 8.507059e+37
    %v557 = vand.u32 %v545, 2147483648
    %v558 = vor.u32 1.1754944e-38, %v557
    %v559 = vsel %vm556, %v558, %v554
    %v560 = vmul.f32 1.0, %v559
    %v561 = vtanh.pop %v541
    %v562 = vmul.f32 %v560, %v507
    %564 = vrot.lane.b32.xlu0 %v561, 32
    %v565 = vpop.permute.xlu0 %564
    %v567 = vmul.f32 %v560, %v565
    %569 = vrot.lane.b32.xlu0 %v567, 32
    %v570 = vpop.permute.xlu0 %569
    %v572 = vadd.f32 %v562, %v570
    %v573 = vtanh.pop %v572
    %575 = vrot.lane.b32.xlu0 %v573, 32
    %v576 = vpop.permute.xlu0 %575
    %v578 = vmul.f32 %v560, %v576
    %580 = vrot.lane.b32.xlu0 %v578, 64
    %v581 = vpop.permute.xlu0 %580
    %583 = vst.msk [vmem:[#allocation2] sm:$0xff] %vm58, %v581
    %585 = vrot.lane.b32.xlu0 %v572, 96
    %v586 = vpop.permute.xlu0 %585
    %588 = vst.msk [vmem:[#allocation3] sm:$0xff] %vm58, %v586
    // Predicated region
    $region22: #{tpu_custom_call.1} parent=1 // pred_check
      %p589 = pneg %p44
    $region23: #{tpu_custom_call.1} parent=1 // pred_check_branch
      %591 = sbr.rel (%p589) target = $region25
    $region24: #{tpu_custom_call.1} parent=1 // pred_region
      %592 = vst.msk [vmem:[#allocation9] sm:$0xff] %vm58, %v581
    $region25: #{tpu_custom_call.1} parent=1 // pred_fallthru
      _
    // Predicated region
    $region26: #{tpu_custom_call.1} parent=1 // pred_check
      _
    $region27: #{tpu_custom_call.1} parent=1 // pred_check_branch
      %594 = sbr.rel (0) target = $region29
    $region28: #{tpu_custom_call.1} parent=1 // pred_region
      %596 = vsyncadd [#allocation6], 0
      %s598 = sshll.u32 [#allocation9], 4
      %s599 = int_to_ptr.vmem [resolvable:$true] %s598
      %s600 = sshll.u32 %s2, 4
      %s601 = int_to_ptr.hbm [resolvable:$true] %s600
      %603 = dma.vmem_to_hbm [thread:$0]  %s599, 128, %s601, [#allocation6]
    $region29: #{tpu_custom_call.1} parent=1 // pred_fallthru
      _
    // Predicated region
    $region30: #{tpu_custom_call.1} parent=1 // pred_check
      _
    $region31: #{tpu_custom_call.1} parent=1 // pred_check_branch
      %605 = sbr.rel (0) target = $region33
    $region32: #{tpu_custom_call.1} parent=1 // pred_region
      %607 = dma.done [#allocation6], 128
    $region33: #{tpu_custom_call.1} parent=1 // pred_fallthru
      _
    %608 = vsyncpa [#allocation5], 1
    %609 = vsyncpa [#allocation8], 1
    %610 = vsyncpa [#allocation6], 1

</llo_original>
